<compile_context>
chip_gen: v7x
topology: tpu7x:2x2x1
jax: 0.10.0
libtpu: 0.0.40
codegen_flags: <defaults>
</compile_context>

<pallas_src>
import jax
import jax.numpy as jnp
from jax.experimental import pallas as pl
from jax.experimental.pallas import tpu as pltpu

RAYS_PER_ROW = 128          # rays per slab row
LANES = 3 * RAYS_PER_ROW    # 384 lanes: one slab row == 128 rays * RGB (multiple of 128)
MAX_ROW_BLOCK = 1024        # up to (1024, 384) f32 = 1.5 MiB per tensor per grid step


def _cdiv(a, b):
    return -(-a // b)


def _round_up(x, m):
    return _cdiv(x, m) * m


def _num_tensorcores():
    """TensorCores per chip to split the reduction across (2 on v7x-class chips).

    Falls back to 1 (always correct, just single-core) if the info isn't exposed.
    Only values 1 or 2 are accepted to avoid mis-sizing a CORE_PARALLEL axis.
    """
    try:
        info = pltpu.get_tpu_info()
    except Exception:
        return 1
    for attr in ("num_cores", "core_count", "num_tensorcores", "tensorcore_count",
                 "cores_per_chip", "num_cores_per_chip"):
        v = getattr(info, attr, None)
        if isinstance(v, int) and v in (1, 2):
            return v
    return 1


def _make_kernel(has_coarse, blocks_per_core, total_blocks):
    """Masked squared-error partial-sum kernel.

    Refs (with coarse):    fine, coarse, tgt, mask, expand, sum_fine, sum_coarse
    Refs (without coarse): fine, tgt, mask, expand, sum_fine
    Data refs are (row_block, LANES); mask is per-ray (row_block, 128) int8; expand is the
    constant (128, 384) lane-expansion matrix; outputs are (1, 1, LANES) per-core accumulators.
    """

    def kernel(*refs):
        if has_coarse:
            fine_ref, coarse_ref, tgt_ref, mask_ref, exp_ref, sf_ref, sc_ref = refs
        else:
            fine_ref, tgt_ref, mask_ref, exp_ref, sf_ref = refs
            coarse_ref = sc_ref = None

        c = pl.program_id(0)           # core-split axis
        i = pl.program_id(1)           # reduction axis (last, "arbitrary")

        @pl.when(i == 0)
        def _init():
            sf_ref[...] = jnp.zeros_like(sf_ref)
            if has_coarse:
                sc_ref[...] = jnp.zeros_like(sc_ref)

        block_id = c * blocks_per_core + i   # blocks_per_core / total_blocks are Python ints

        @pl.when(block_id < total_blocks)    # skip blocks past the end (uneven core split)
        def _accumulate():
            # Expand the per-ray mask (R,128) to per-element (R,384) on the idle MXU:
            #   sel[:, 3k+ch] = mask[:, k].  Exact 0/1 values.
            m = mask_ref[...].astype(jnp.float32)
            sel = jnp.dot(m, exp_ref[...], preferred_element_type=jnp.float32) > 0.5

            t = tgt_ref[...].astype(jnp.float32)

            # Select (not multiply): garbage rows of partial boundary tiles and NaN/Inf in
            # masked-out predictions contribute exactly 0.
            df = jnp.where(sel, fine_ref[...].astype(jnp.float32) - t, 0.0)
            sf_ref[...] += jnp.sum(df * df, axis=0, keepdims=True).reshape(sf_ref.shape)

            if has_coarse:
                dc = jnp.where(sel, coarse_ref[...].astype(jnp.float32) - t, 0.0)
                sc_ref[...] += jnp.sum(dc * dc, axis=0, keepdims=True).reshape(sc_ref.shape)

    return kernel


def color_loss_merged(inputs, batch, coef=1.0):
    targets = jnp.asarray(batch['rgbs']).reshape(-1, 3)
    valid = jnp.asarray(batch['valid_mask']).reshape(-1)
    fine = jnp.asarray(inputs['rgb_merged_fine']).reshape(-1, 3)
    has_coarse = 'rgb_merged_coarse' in inputs

    n = targets.shape[0]
    rows = max(1, _cdiv(n, RAYS_PER_ROW))          # slab rows (128 rays each)

    num_cores = _num_tensorcores()
    # Adaptive block: one block per core for small inputs, capped at MAX_ROW_BLOCK for large.
    # Multiple of 32 keeps the int8 mask block tiling-safe (and trivially satisfies f32's 8).
    row_block = min(MAX_ROW_BLOCK, _round_up(_cdiv(rows, num_cores), 32))
    total_blocks = _cdiv(rows, row_block)
    blocks_per_core = _cdiv(total_blocks, num_cores)

    def data_slab(x):
        # Row-major flatten is free. When N % 128 == 0 the reshape is also free (no copy).
        flat = x.reshape(-1)
        want = rows * LANES
        if flat.shape[0] != want:
            # TODO(synk): ragged ray counts (N % 128 != 0) force a full-array pad/copy of the
            # data tensors here; typical NeRF ray batches are multiples of 128 and skip it.
            flat = jnp.pad(flat, (0, want - flat.shape[0]))
        return flat.reshape(rows, LANES)

    fine2d = data_slab(fine)
    tgt2d = data_slab(targets)

    # Per-ray int8 mask, zero-padded so every block the grid touches is fully defined (this is
    # the only thing padded on the aligned path, and it is 1 byte per ray).
    mask_rows = total_blocks * row_block
    mask_flat = valid.astype(jnp.int8)
    if n != mask_rows * RAYS_PER_ROW:
        mask_flat = jnp.pad(mask_flat, (0, mask_rows * RAYS_PER_ROW - n))
    mask2d = mask_flat.reshape(mask_rows, RAYS_PER_ROW)

    # Constant lane-expansion matrix: expand[k, 3k+ch] = 1  (128 x 384, ~192 KiB, DMA'd once).
    expand = (jnp.arange(LANES, dtype=jnp.int32)[None, :] // 3
              == jnp.arange(RAYS_PER_ROW, dtype=jnp.int32)[:, None]).astype(jnp.float32)

    def data_index_map(c, i):
        # Clamp so no DMA starts past the array end; out-of-range blocks are skipped in-kernel.
        return (jnp.minimum(c * blocks_per_core + i, total_blocks - 1), 0)

    data_spec = pl.BlockSpec((row_block, LANES), data_index_map)
    mask_spec = pl.BlockSpec((row_block, RAYS_PER_ROW), data_index_map)
    exp_spec = pl.BlockSpec((RAYS_PER_ROW, LANES), lambda c, i: (0, 0))
    out_spec = pl.BlockSpec((1, 1, LANES), lambda c, i: (c, 0, 0))   # per-core resident acc

    if has_coarse:
        coarse2d = data_slab(jnp.asarray(inputs['rgb_merged_coarse']).reshape(-1, 3))
        operands = (fine2d, coarse2d, tgt2d, mask2d, expand)
        in_specs = [data_spec, data_spec, data_spec, mask_spec, exp_spec]
        num_outs = 2
    else:
        operands = (fine2d, tgt2d, mask2d, expand)
        in_specs = [data_spec, data_spec, mask_spec, exp_spec]
        num_outs = 1

    core_sem = pltpu.CORE_PARALLEL if num_cores > 1 else pltpu.ARBITRARY

    res = pl.pallas_call(
        _make_kernel(has_coarse, blocks_per_core, total_blocks),
        out_shape=tuple(jax.ShapeDtypeStruct((num_cores, 1, LANES), jnp.float32)
                        for _ in range(num_outs)),
        grid_spec=pltpu.PrefetchScalarGridSpec(
            num_scalar_prefetch=0,
            grid=(num_cores, blocks_per_core),
            in_specs=in_specs,
            out_specs=[out_spec] * num_outs,
        ),
        compiler_params=pltpu.CompilerParams(
            dimension_semantics=(core_sem, pltpu.ARBITRARY),
            vmem_limit_bytes=32 * 1024 * 1024),
    )(*operands)
    if not isinstance(res, (list, tuple)):
        res = (res,)

    # Tiny final reductions and the division in JAX. Denominator is exact (int32 count).
    denom = 3.0 * jnp.sum(valid.astype(jnp.int32)).astype(jnp.float32)
    # TODO(synk): denom == 0 (no valid rays) yields NaN, matching PyTorch's mean of an empty selection.
    loss = jnp.sum(res[0]) / denom
    if has_coarse:
        loss = loss + jnp.sum(res[1]) / denom
    return coef * loss


def _reference_loss(inputs, batch, coef=1.0):
    """Pure-JAX reference matching the PyTorch masked-MSE semantics."""
    t = jnp.asarray(batch['rgbs']).reshape(-1, 3).astype(jnp.float32)
    m = jnp.asarray(batch['valid_mask']).reshape(-1, 1).astype(jnp.float32)
    f = jnp.asarray(inputs['rgb_merged_fine']).reshape(-1, 3).astype(jnp.float32)
    denom = 3.0 * jnp.sum(m)
    loss = jnp.sum(((f - t) ** 2) * m) / denom
    if 'rgb_merged_coarse' in inputs:
        c = jnp.asarray(inputs['rgb_merged_coarse']).reshape(-1, 3).astype(jnp.float32)
        loss = loss + jnp.sum(((c - t) ** 2) * m) / denom
    return coef * loss


if __name__ == "__main__":
    key = jax.random.PRNGKey(0)
    k1, k2, k3, k4 = jax.random.split(key, 4)

    B, HW = 2, 256                      # 2 images, 16x16 rays each -> 512 rays (multiple of 128)
    N = B * HW

    batch = {
        'rgbs': jax.random.uniform(k1, (B, HW, 3), dtype=jnp.float32),
        'valid_mask': jax.random.uniform(k2, (B, HW)) > 0.3,   # bool per-ray mask
    }
    inputs = {
        'rgb_merged_fine': jax.random.uniform(k3, (N, 3), dtype=jnp.float32),
        'rgb_merged_coarse': jax.random.uniform(k4, (N, 3), dtype=jnp.float32),
    }

    # Fine + coarse path (zero-copy, N % 128 == 0).
    loss = jax.block_until_ready(color_loss_merged(inputs, batch, coef=1.0))
    ref = jax.block_until_ready(_reference_loss(inputs, batch, coef=1.0))
    assert jnp.allclose(loss, ref, rtol=1e-5, atol=1e-6), (loss, ref)

    # Fine-only fast path (no coarse input -> smaller operand/output set).
    inputs_fine_only = {'rgb_merged_fine': inputs['rgb_merged_fine']}
    loss_f = jax.block_until_ready(color_loss_merged(inputs_fine_only, batch, coef=0.5))
    ref_f = jax.block_until_ready(_reference_loss(inputs_fine_only, batch, coef=0.5))
    assert jnp.allclose(loss_f, ref_f, rtol=1e-5, atol=1e-6), (loss_f, ref_f)

    # Ragged ray count (N % 128 != 0): exercises partial boundary tiles + where-masking.
    Nr = 300
    kr = jax.random.split(k4, 4)
    batch_r = {
        'rgbs': jax.random.uniform(kr[0], (Nr, 3), dtype=jnp.float32),
        'valid_mask': jax.random.uniform(kr[1], (Nr,)) > 0.5,
    }
    inputs_r = {
        'rgb_merged_fine': jax.random.uniform(kr[2], (Nr, 3), dtype=jnp.float32),
        'rgb_merged_coarse': jax.random.uniform(kr[3], (Nr, 3), dtype=jnp.float32),
    }
    loss_r = jax.block_until_ready(color_loss_merged(inputs_r, batch_r, coef=1.0))
    ref_r = jax.block_until_ready(_reference_loss(inputs_r, batch_r, coef=1.0))
    assert jnp.allclose(loss_r, ref_r, rtol=1e-5, atol=1e-6), (loss_r, ref_r)

    print("KERNEL_OK")
</pallas_src>

<mosaic_0001>
module attributes {stable_mosaic.version = 11 : i64} {
  func.func @kernel(%arg0: i32, %arg1: i32, %arg2: memref<32x384xf32, #tpu.memory_space<vmem>>, %arg3: memref<32x384xf32, #tpu.memory_space<vmem>>, %arg4: memref<32x384xf32, #tpu.memory_space<vmem>>, %arg5: memref<32x128xi8, #tpu.memory_space<vmem>>, %arg6: memref<128x384xf32, #tpu.memory_space<vmem>>, %arg7: memref<1x1x384xf32, #tpu.memory_space<vmem>>, %arg8: memref<1x1x384xf32, #tpu.memory_space<vmem>>) attributes {dimension_semantics = [#tpu.dimension_semantics<arbitrary>, #tpu.dimension_semantics<arbitrary>], iteration_bounds = array<i64: 1, 1>, scalar_prefetch = 0 : i64, scratch_operands = 0 : i64, tpu.core_type = #tpu.core_type<tc>, window_params = [{transform_indices = @transform_0, window_bounds = array<i64: 32, 384>}, {transform_indices = @transform_1, window_bounds = array<i64: 32, 384>}, {transform_indices = @transform_2, window_bounds = array<i64: 32, 384>}, {transform_indices = @transform_3, window_bounds = array<i64: 32, 128>}, {pipeline_mode = #tpu.pipeline_mode<synchronous>, transform_indices = @transform_4, window_bounds = array<i64: 128, 384>}, {transform_indices = @transform_5, window_bounds = array<i64: 1, 1, 384>}, {transform_indices = @transform_6, window_bounds = array<i64: 1, 1, 384>}]} {
    %c0_i32 = arith.constant 0 : i32
    %0 = arith.cmpi eq, %arg1, %c0_i32 : i32
    %1 = arith.extui %0 : i1 to i32
    %c0_i32_0 = arith.constant 0 : i32
    %2 = arith.cmpi ne, %1, %c0_i32_0 : i32
    scf.if %2 {
      %cst = arith.constant 0.000000e+00 : f32
      %8 = vector.broadcast %cst : f32 to vector<1x1x384xf32>
      %c0 = arith.constant 0 : index
      %c0_3 = arith.constant 0 : index
      %c0_4 = arith.constant 0 : index
      %9 = vector.load %arg7[%c0, %c0_3, %c0_4] : memref<1x1x384xf32, #tpu.memory_space<vmem>>, vector<1x1x384xf32>
      tpu.vector_store %arg7[%c0, %c0_3, %c0_4], %8 {strides = array<i32>} : memref<1x1x384xf32, #tpu.memory_space<vmem>>, vector<1x1x384xf32>,
      %cst_5 = arith.constant 0.000000e+00 : f32
      %10 = vector.broadcast %cst_5 : f32 to vector<1x1x384xf32>
      %c0_6 = arith.constant 0 : index
      %c0_7 = arith.constant 0 : index
      %c0_8 = arith.constant 0 : index
      %11 = vector.load %arg8[%c0_6, %c0_7, %c0_8] : memref<1x1x384xf32, #tpu.memory_space<vmem>>, vector<1x1x384xf32>
      tpu.vector_store %arg8[%c0_6, %c0_7, %c0_8], %10 {strides = array<i32>} : memref<1x1x384xf32, #tpu.memory_space<vmem>>, vector<1x1x384xf32>,
    } else {
    }
    %c1_i32 = arith.constant 1 : i32
    %3 = arith.muli %arg0, %c1_i32 : i32
    %4 = arith.addi %3, %arg1 : i32
    %c1_i32_1 = arith.constant 1 : i32
    %5 = arith.cmpi slt, %4, %c1_i32_1 : i32
    %6 = arith.extui %5 : i1 to i32
    %c0_i32_2 = arith.constant 0 : i32
    %7 = arith.cmpi ne, %6, %c0_i32_2 : i32
    scf.if %7 {
      %c0 = arith.constant 0 : index
      %c0_3 = arith.constant 0 : index
      %8 = vector.load %arg5[%c0, %c0_3] : memref<32x128xi8, #tpu.memory_space<vmem>>, vector<32x128xi8>
      %9 = arith.sitofp %8 : vector<32x128xi8> to vector<32x128xf32>
      %c0_4 = arith.constant 0 : index
      %c0_5 = arith.constant 0 : index
      %10 = vector.load %arg6[%c0_4, %c0_5] : memref<128x384xf32, #tpu.memory_space<vmem>>, vector<128x384xf32>
      %cst = arith.constant dense<0.000000e+00> : vector<32x384xf32>
      %11 = tpu.matmul %9, %10, %cst {dimension_numbers = #tpu.dot_dimension_numbers<[1], [0], [0], [1], [0, 0, 1, 1], [], []>} : vector<32x128xf32>, vector<128x384xf32>, vector<32x384xf32> -> vector<32x384xf32>
      %cst_6 = arith.constant 5.000000e-01 : f32
      %12 = vector.broadcast %cst_6 : f32 to vector<32x384xf32>
      %13 = arith.cmpf ogt, %11, %12 : vector<32x384xf32>
      %c0_7 = arith.constant 0 : index
      %c0_8 = arith.constant 0 : index
      %14 = vector.load %arg4[%c0_7, %c0_8] : memref<32x384xf32, #tpu.memory_space<vmem>>, vector<32x384xf32>
      %c0_9 = arith.constant 0 : index
      %c0_10 = arith.constant 0 : index
      %15 = vector.load %arg2[%c0_9, %c0_10] : memref<32x384xf32, #tpu.memory_space<vmem>>, vector<32x384xf32>
      %16 = arith.subf %15, %14 : vector<32x384xf32>
      %cst_11 = arith.constant 0.000000e+00 : f32
      %17 = vector.broadcast %cst_11 : f32 to vector<32x384xf32>
      %18 = arith.select %13, %16, %17 : vector<32x384xi1>, vector<32x384xf32>
      %c0_12 = arith.constant 0 : index
      %c0_13 = arith.constant 0 : index
      %c0_14 = arith.constant 0 : index
      %19 = vector.load %arg7[%c0_12, %c0_13, %c0_14] : memref<1x1x384xf32, #tpu.memory_space<vmem>>, vector<1x1x384xf32>
      %20 = arith.mulf %18, %18 : vector<32x384xf32>
      %cst_15 = arith.constant dense<0.000000e+00> : vector<384xf32>
      %21 = vector.multi_reduction <add>, %20, %cst_15 [0] : vector<32x384xf32> to vector<384xf32>
      %22 = vector.shape_cast %21 : vector<384xf32> to vector<1x384xf32>
      %23 = vector.shape_cast %22 : vector<1x384xf32> to vector<1x1x384xf32>
      %24 = arith.addf %19, %23 : vector<1x1x384xf32>
      %c0_16 = arith.constant 0 : index
      %c0_17 = arith.constant 0 : index
      %c0_18 = arith.constant 0 : index
      %25 = vector.load %arg7[%c0_16, %c0_17, %c0_18] : memref<1x1x384xf32, #tpu.memory_space<vmem>>, vector<1x1x384xf32>
      tpu.vector_store %arg7[%c0_16, %c0_17, %c0_18], %24 {strides = array<i32>} : memref<1x1x384xf32, #tpu.memory_space<vmem>>, vector<1x1x384xf32>,
      %c0_19 = arith.constant 0 : index
      %c0_20 = arith.constant 0 : index
      %26 = vector.load %arg3[%c0_19, %c0_20] : memref<32x384xf32, #tpu.memory_space<vmem>>, vector<32x384xf32>
      %27 = arith.subf %26, %14 : vector<32x384xf32>
      %cst_21 = arith.constant 0.000000e+00 : f32
      %28 = vector.broadcast %cst_21 : f32 to vector<32x384xf32>
      %29 = arith.select %13, %27, %28 : vector<32x384xi1>, vector<32x384xf32>
      %c0_22 = arith.constant 0 : index
      %c0_23 = arith.constant 0 : index
      %c0_24 = arith.constant 0 : index
      %30 = vector.load %arg8[%c0_22, %c0_23, %c0_24] : memref<1x1x384xf32, #tpu.memory_space<vmem>>, vector<1x1x384xf32>
      %31 = arith.mulf %29, %29 : vector<32x384xf32>
      %cst_25 = arith.constant dense<0.000000e+00> : vector<384xf32>
      %32 = vector.multi_reduction <add>, %31, %cst_25 [0] : vector<32x384xf32> to vector<384xf32>
      %33 = vector.shape_cast %32 : vector<384xf32> to vector<1x384xf32>
      %34 = vector.shape_cast %33 : vector<1x384xf32> to vector<1x1x384xf32>
      %35 = arith.addf %30, %34 : vector<1x1x384xf32>
      %c0_26 = arith.constant 0 : index
      %c0_27 = arith.constant 0 : index
      %c0_28 = arith.constant 0 : index
      %36 = vector.load %arg8[%c0_26, %c0_27, %c0_28] : memref<1x1x384xf32, #tpu.memory_space<vmem>>, vector<1x1x384xf32>
      tpu.vector_store %arg8[%c0_26, %c0_27, %c0_28], %35 {strides = array<i32>} : memref<1x1x384xf32, #tpu.memory_space<vmem>>, vector<1x1x384xf32>,
    } else {
    }
    return
  }
  func.func @transform_0(%arg0: i32, %arg1: i32) -> (i32, i32) {
    %c1_i32 = arith.constant 1 : i32
    %0 = arith.muli %arg0, %c1_i32 : i32
    %1 = arith.addi %0, %arg1 : i32
    %c0_i32 = arith.constant 0 : i32
    %2 = arith.minsi %1, %c0_i32 : i32
    %c0_i32_0 = arith.constant 0 : i32
    %c0_i32_1 = arith.constant 0 : i32
    return %2, %c0_i32_0 : i32, i32
  }
  func.func @transform_1(%arg0: i32, %arg1: i32) -> (i32, i32) {
    %c1_i32 = arith.constant 1 : i32
    %0 = arith.muli %arg0, %c1_i32 : i32
    %1 = arith.addi %0, %arg1 : i32
    %c0_i32 = arith.constant 0 : i32
    %2 = arith.minsi %1, %c0_i32 : i32
    %c0_i32_0 = arith.constant 0 : i32
    %c0_i32_1 = arith.constant 0 : i32
    return %2, %c0_i32_0 : i32, i32
  }
  func.func @transform_2(%arg0: i32, %arg1: i32) -> (i32, i32) {
    %c1_i32 = arith.constant 1 : i32
    %0 = arith.muli %arg0, %c1_i32 : i32
    %1 = arith.addi %0, %arg1 : i32
    %c0_i32 = arith.constant 0 : i32
    %2 = arith.minsi %1, %c0_i32 : i32
    %c0_i32_0 = arith.constant 0 : i32
    %c0_i32_1 = arith.constant 0 : i32
    return %2, %c0_i32_0 : i32, i32
  }
  func.func @transform_3(%arg0: i32, %arg1: i32) -> (i32, i32) {
    %c1_i32 = arith.constant 1 : i32
    %0 = arith.muli %arg0, %c1_i32 : i32
    %1 = arith.addi %0, %arg1 : i32
    %c0_i32 = arith.constant 0 : i32
    %2 = arith.minsi %1, %c0_i32 : i32
    %c0_i32_0 = arith.constant 0 : i32
    %c0_i32_1 = arith.constant 0 : i32
    return %2, %c0_i32_0 : i32, i32
  }
  func.func @transform_4(%arg0: i32, %arg1: i32) -> (i32, i32) {
    %c0_i32 = arith.constant 0 : i32
    %c0_i32_0 = arith.constant 0 : i32
    %c0_i32_1 = arith.constant 0 : i32
    return %c0_i32, %c0_i32_0 : i32, i32
  }
  func.func @transform_5(%arg0: i32, %arg1: i32) -> (i32, i32, i32) {
    %c0_i32 = arith.constant 0 : i32
    %c0_i32_0 = arith.constant 0 : i32
    %c0_i32_1 = arith.constant 0 : i32
    return %arg0, %c0_i32, %c0_i32_0 : i32, i32, i32
  }
  func.func @transform_6(%arg0: i32, %arg1: i32) -> (i32, i32, i32) {
    %c0_i32 = arith.constant 0 : i32
    %c0_i32_0 = arith.constant 0 : i32
    %c0_i32_1 = arith.constant 0 : i32
    return %arg0, %c0_i32, %c0_i32_0 : i32, i32, i32
  }
}

</mosaic_0001>

<llo_original>
// kernel: tpu_custom_call.1
$region0: #{tpu_custom_call.1}
  #allocation0 [shape = 'u32[]', space=smem, size = 0x4, offset = 0x4, fixed_abs, tag = 'smem constant byte address 0x4 - core index']
  #allocation1 [shape = 'u32[144,128]{1,0:T(1,128)}', space=vmem, size = 0x12000, scoped, tag = 'internal scratch']
  %s0 = inlined_call_operand.hbm [shape: f32[4,384], index: 0, kind: input, shape index: {}]
  %s1 = inlined_call_operand.hbm [shape: f32[4,384], index: 1, kind: input, shape index: {}]
  %s2 = inlined_call_operand.hbm [shape: f32[4,384], index: 2, kind: input, shape index: {}]
  %s3 = inlined_call_operand.vmem [shape: s8[32,128], index: 3, kind: input, shape index: {}]
  %s4 = inlined_call_operand.hbm [shape: f32[128,384], index: 4, kind: input, shape index: {}]
  %s5 = inlined_call_operand.hbm [shape: f32[1,1,384], index: 5, kind: output, shape index: {0}]
  %s6 = inlined_call_operand.hbm [shape: f32[1,1,384], index: 6, kind: output, shape index: {1}]
  %7 = xla_tuple %s5, %s6
  %s8 = sld [smem:[#allocation0]]
  $region62: #{tpu_custom_call.1} parent=0
    _
  %s10 = ssub.s32 1, %s8
  %s11 = scalar_select 0, %s10, %s8
  $region1: #{tpu_custom_call.1} parent=0
    #allocation2 [shape = 'u8[49152]{0}', space=vmem, size = 0xc000, scoped, tag = 'input window, operand 0, single buffered']
    #allocation3 [shape = 's32[1]{0}', space=sflag, size = 0x4, scoped, tag = 'scoped memory for tpu_custom_call.1']
    #allocation4 [shape = 's32[1]{0}', space=sflag, size = 0x4, scoped, tag = 'scoped memory for tpu_custom_call.1']
    #allocation5 [shape = 'u8[49152]{0}', space=vmem, size = 0xc000, scoped, tag = 'input window, operand 1, single buffered']
    #allocation6 [shape = 's32[1]{0}', space=sflag, size = 0x4, scoped, tag = 'scoped memory for tpu_custom_call.1']
    #allocation7 [shape = 'u8[49152]{0}', space=vmem, size = 0xc000, scoped, tag = 'input window, operand 2, single buffered']
    #allocation8 [shape = 'u8[196608]{0}', space=vmem, size = 0x30000, scoped, tag = 'input window, operand 4, single buffered']
    #allocation9 [shape = 's32[1]{0}', space=sflag, size = 0x4, scoped, tag = 'scoped memory for tpu_custom_call.1']
    #allocation10 [shape = 'u8[1536]{0}', space=vmem, size = 0x800, scoped, tag = 'output window, operand 0, single buffered']
    #allocation11 [shape = 'u8[1536]{0}', space=vmem, size = 0x800, scoped, tag = 'output window, operand 1, single buffered']
    #allocation12 [shape = 's32[1]{0}', space=sflag, size = 0x4, scoped, tag = 'scoped memory for tpu_custom_call.1']
    %12 = vsyncpa [#allocation3], 0
    %13 = vsyncpa [#allocation6], 0
    %14 = vsyncpa [#allocation9], 0
    %15 = vsyncpa [#allocation4], 0
    %16 = vsyncpa [#allocation12], 0
    // Predicated region
    $region2: #{tpu_custom_call.1} parent=1 // pred_check
      _
    $region3: #{tpu_custom_call.1} parent=1 // pred_check_branch
      %18 = sbr.rel (0) target = $region5
    $region4: #{tpu_custom_call.1} parent=1 // pred_region
      %s19 = sadd.s32 0, 0
      %p20 = scmp.lt.s32.totalorder %s19, 0
      %s21 = scalar_select %p20, %s19, 0
      %s22 = smul.u32 8, %s21
      %s23 = ssub.s32 1, %s22
      %s24 = smul.u32 64, %s23
      %s25 = smul.u32 %s24, 3
      %s27 = ssub.s32 1536, %s25
      %28 = vsyncadd [#allocation3], %s27
      %p29 = scmp.ne.s32.totalorder 0, %s25
      %s30 = smul.addr %s22, 3
      %s31 = smul.addr %s30, 64
      %s32 = scalar_lea.hbm %s0, %s31
      %s33 = smul.u32 12, %s23
      %s34 = sshll.u32 [#allocation2], 4
      %s35 = int_to_ptr.vmem [resolvable:$true] %s34
      %s36 = sshll.u32 %s33, 4
      %40 = dma.hbm_to_vmem [thread:$0]  (%p29), %s32, %s36, %s35, [#allocation3], 192, 192, 12
    $region5: #{tpu_custom_call.1} parent=1 // pred_fallthru
      _
    // Predicated region
    $region6: #{tpu_custom_call.1} parent=1 // pred_check
      _
    $region7: #{tpu_custom_call.1} parent=1 // pred_check_branch
      %42 = sbr.rel (0) target = $region9
    $region8: #{tpu_custom_call.1} parent=1 // pred_region
      %s43 = sadd.s32 0, 0
      %p44 = scmp.lt.s32.totalorder %s43, 0
      %s45 = scalar_select %p44, %s43, 0
      %s46 = smul.u32 8, %s45
      %s47 = ssub.s32 1, %s46
      %s48 = smul.u32 64, %s47
      %s49 = smul.u32 %s48, 3
      %s51 = ssub.s32 1536, %s49
      %52 = vsyncadd [#allocation6], %s51
      %p53 = scmp.ne.s32.totalorder 0, %s49
      %s54 = smul.addr %s46, 3
      %s55 = smul.addr %s54, 64
      %s56 = scalar_lea.hbm %s1, %s55
      %s57 = smul.u32 12, %s47
      %s58 = sshll.u32 [#allocation5], 4
      %s59 = int_to_ptr.vmem [resolvable:$true] %s58
      %s60 = sshll.u32 %s57, 4
      %64 = dma.hbm_to_vmem [thread:$0]  (%p53), %s56, %s60, %s59, [#allocation6], 192, 192, 12
    $region9: #{tpu_custom_call.1} parent=1 // pred_fallthru
      _
    // Predicated region
    $region10: #{tpu_custom_call.1} parent=1 // pred_check
      _
    $region11: #{tpu_custom_call.1} parent=1 // pred_check_branch
      %66 = sbr.rel (0) target = $region13
    $region12: #{tpu_custom_call.1} parent=1 // pred_region
      %s67 = sadd.s32 0, 0
      %p68 = scmp.lt.s32.totalorder %s67, 0
      %s69 = scalar_select %p68, %s67, 0
      %s70 = smul.u32 8, %s69
      %s71 = ssub.s32 1, %s70
      %s72 = smul.u32 64, %s71
      %s73 = smul.u32 %s72, 3
      %s75 = ssub.s32 1536, %s73
      %76 = vsyncadd [#allocation6], %s75
      %p77 = scmp.ne.s32.totalorder 0, %s73
      %s78 = smul.addr %s70, 3
      %s79 = smul.addr %s78, 64
      %s80 = scalar_lea.hbm %s2, %s79
      %s81 = smul.u32 12, %s71
      %s82 = sshll.u32 [#allocation7], 4
      %s83 = int_to_ptr.vmem [resolvable:$true] %s82
      %s84 = sshll.u32 %s81, 4
      %88 = dma.hbm_to_vmem [thread:$0]  (%p77), %s80, %s84, %s83, [#allocation6], 192, 192, 12
    $region13: #{tpu_custom_call.1} parent=1 // pred_fallthru
      _
    // Predicated region
    $region14: #{tpu_custom_call.1} parent=1 // pred_check
      _
    $region15: #{tpu_custom_call.1} parent=1 // pred_check_branch
      %90 = sbr.rel (0) target = $region17
    $region16: #{tpu_custom_call.1} parent=1 // pred_region
      %s91 = sadd.s32 0, 0
      %p92 = scmp.lt.s32.totalorder %s91, 0
      %s93 = scalar_select %p92, %s91, 0
      %p94 = scmp.lt.s32.totalorder %s93, 0
      %s95 = scalar_select %p94, %s93, 0
      %s96 = smul.addr %s95, 8
      %s97 = scalar_lea.vmem %s3, %s96
      %s98 = sadd.s32 0, 0
      %p99 = scmp.lt.s32.totalorder %s98, 0
      %s100 = scalar_select %p99, %s98, 0
    $region17: #{tpu_custom_call.1} parent=1 // pred_fallthru
      _
    // Predicated region
    $region18: #{tpu_custom_call.1} parent=1 // pred_check
      _
    $region19: #{tpu_custom_call.1} parent=1 // pred_check_branch
      %102 = sbr.rel (0) target = $region21
    $region20: #{tpu_custom_call.1} parent=1 // pred_region
      %s104 = ssub.s32 6144, 6144
      %105 = vsyncadd [#allocation9], %s104
      %s106 = sshll.u32 [#allocation8], 4
      %s107 = int_to_ptr.vmem [resolvable:$true] %s106
      %112 = dma.hbm_to_vmem [thread:$0]  %s4, 6144, %s107, [#allocation9], 384, 384, 24
    $region21: #{tpu_custom_call.1} parent=1 // pred_fallthru
      _
    // Predicated region
    $region22: #{tpu_custom_call.1} parent=1 // pred_check
      _
    $region23: #{tpu_custom_call.1} parent=1 // pred_check_branch
      %114 = sbr.rel (0) target = $region25
    $region24: #{tpu_custom_call.1} parent=1 // pred_region
      %115 = dma.done [#allocation3], 1536
    $region25: #{tpu_custom_call.1} parent=1 // pred_fallthru
      _
    // Predicated region
    $region26: #{tpu_custom_call.1} parent=1 // pred_check
      _
    $region27: #{tpu_custom_call.1} parent=1 // pred_check_branch
      %117 = sbr.rel (0) target = $region29
    $region28: #{tpu_custom_call.1} parent=1 // pred_region
      %118 = dma.done [#allocation6], 1536
    $region29: #{tpu_custom_call.1} parent=1 // pred_fallthru
      _
    // Predicated region
    $region30: #{tpu_custom_call.1} parent=1 // pred_check
      _
    $region31: #{tpu_custom_call.1} parent=1 // pred_check_branch
      %120 = sbr.rel (0) target = $region33
    $region32: #{tpu_custom_call.1} parent=1 // pred_region
      %121 = dma.done [#allocation6], 1536
    $region33: #{tpu_custom_call.1} parent=1 // pred_fallthru
      _
    // Predicated region
    $region34: #{tpu_custom_call.1} parent=1 // pred_check
      _
    $region35: #{tpu_custom_call.1} parent=1 // pred_check_branch
      %123 = sbr.rel (0) target = $region37
    $region36: #{tpu_custom_call.1} parent=1 // pred_region
      %124 = dma.done [#allocation9], 6144
    $region37: #{tpu_custom_call.1} parent=1 // pred_fallthru
      _
    %s125 = sadd.s32 0, 0
    %p126 = scmp.lt.s32.totalorder %s125, 0
    %s127 = scalar_select %p126, %s125, 0
    %p128 = scmp.lt.s32.totalorder %s127, 0
    %s129 = scalar_select %p128, %s127, 0
    %s130 = smul.addr %s129, 8
    %s131 = scalar_lea.vmem %s3, %s130
    %s132 = sadd.s32 0, 0
    %p133 = scmp.lt.s32.totalorder %s132, 0
    %s134 = scalar_select %p133, %s132, 0
    %s135 = smul.u32 8, %s134
    %s136 = ssub.s32 1, %s135
    %s137 = smul.u32 64, %s136
    %s138 = smul.u32 %s137, 3
    %s139 = sadd.s32 0, 0
    %p140 = scmp.lt.s32.totalorder %s139, 0
    %s141 = scalar_select %p140, %s139, 0
    %s142 = smul.u32 8, %s141
    %s143 = ssub.s32 1, %s142
    %s144 = smul.u32 64, %s143
    %s145 = smul.u32 %s144, 3
    %s146 = sadd.s32 0, 0
    %p147 = scmp.lt.s32.totalorder %s146, 0
    %s148 = scalar_select %p147, %s146, 0
    %s149 = smul.u32 8, %s148
    %s150 = ssub.s32 1, %s149
    %s151 = smul.u32 64, %s150
    %s152 = smul.u32 %s151, 3
    %s153 = sadd.s32 0, 0
    %p154 = scmp.lt.s32.totalorder %s153, 0
    %s155 = scalar_select %p154, %s153, 0
    %p156 = scmp.lt.s32.totalorder %s155, 0
    %s157 = scalar_select %p156, %s155, 0
    %s158 = smul.addr %s157, 8
    %s159 = scalar_lea.vmem %s3, %s158
    %s160 = sadd.s32 0, 0
    %p161 = scmp.lt.s32.totalorder %s160, 0
    %s162 = scalar_select %p161, %s160, 0
    %p163 = scmp.eq.s32.totalorder 0, 0
    // Predicated region
    $region38: #{tpu_custom_call.1} parent=1 // pred_check
      %p164 = pneg %p163
    $region39: #{tpu_custom_call.1} parent=1 // pred_check_branch
      %166 = sbr.rel (%p164) target = $region41
    $region40: #{tpu_custom_call.1} parent=1 // pred_region
      %v167 = vlaneseq
      %vm168 = vcmp.ge.s32.totalorder %v167, 0
      %vm169 = vcmp.lt.s32.totalorder %v167, 384
      %vm170 = vmand %vm168, %vm169
      %171 = vst.msk [vmem:[#allocation10] sm:$0x7] %vm170, 0.0
      %172 = vst.msk [vmem:[#allocation11] sm:$0x7] %vm170, 0.0
    $region41: #{tpu_custom_call.1} parent=1 // pred_fallthru
      _
    %s173 = sadd.s32 0, 0
    %p174 = scmp.lt.s32.totalorder %s173, 1
    // Predicated region
    $region42: #{tpu_custom_call.1} parent=1 // pred_check
      %p175 = pneg %p174
    $region43: #{tpu_custom_call.1} parent=1 // pred_check_branch
      %177 = sbr.rel (%p175) target = $region45
    $region44: #{tpu_custom_call.1} parent=1 // pred_region
      %v178 = vld [vmem:[%s159] sm:$0xff]
      %v179 = vunpack.c.0.s8 %v178
      %v180 = vunpack.c.1.s8 %v178
      %v181 = vunpack.c.2.s8 %v178
      %v182 = vunpack.c.3.s8 %v178
      %v183 = vcvt.s32.f32 %v179
      %v184 = vcvt.s32.f32 %v180
      %v185 = vcvt.s32.f32 %v181
      %v186 = vcvt.s32.f32 %v182
      %v187 = vld [vmem:[#allocation8] sm:$0xff]
      %v188 = vld [vmem:[#allocation8 + $0x8] sm:$0xff]
      %v189 = vld [vmem:[#allocation8 + $0x10] sm:$0xff]
      %v190 = vld [vmem:[#allocation8 + $0x18] sm:$0xff]
      %v191 = vld [vmem:[#allocation8 + $0x20] sm:$0xff]
      %v192 = vld [vmem:[#allocation8 + $0x28] sm:$0xff]
      %v193 = vld [vmem:[#allocation8 + $0x30] sm:$0xff]
      %v194 = vld [vmem:[#allocation8 + $0x38] sm:$0xff]
      %v195 = vld [vmem:[#allocation8 + $0x40] sm:$0xff]
      %v196 = vld [vmem:[#allocation8 + $0x48] sm:$0xff]
      %v197 = vld [vmem:[#allocation8 + $0x50] sm:$0xff]
      %v198 = vld [vmem:[#allocation8 + $0x58] sm:$0xff]
      %v199 = vld [vmem:[#allocation8 + $0x60] sm:$0xff]
      %v200 = vld [vmem:[#allocation8 + $0x68] sm:$0xff]
      %v201 = vld [vmem:[#allocation8 + $0x70] sm:$0xff]
      %v202 = vld [vmem:[#allocation8 + $0x78] sm:$0xff]
      %v203 = vld [vmem:[#allocation8 + $0x80] sm:$0xff]
      %v204 = vld [vmem:[#allocation8 + $0x88] sm:$0xff]
      %v205 = vld [vmem:[#allocation8 + $0x90] sm:$0xff]
      %v206 = vld [vmem:[#allocation8 + $0x98] sm:$0xff]
      %v207 = vld [vmem:[#allocation8 + $0xa0] sm:$0xff]
      %v208 = vld [vmem:[#allocation8 + $0xa8] sm:$0xff]
      %v209 = vld [vmem:[#allocation8 + $0xb0] sm:$0xff]
      %v210 = vld [vmem:[#allocation8 + $0xb8] sm:$0xff]
      %v211 = vld [vmem:[#allocation8 + $0xc0] sm:$0xff]
      %v212 = vld [vmem:[#allocation8 + $0xc8] sm:$0xff]
      %v213 = vld [vmem:[#allocation8 + $0xd0] sm:$0xff]
      %v214 = vld [vmem:[#allocation8 + $0xd8] sm:$0xff]
      %v215 = vld [vmem:[#allocation8 + $0xe0] sm:$0xff]
      %v216 = vld [vmem:[#allocation8 + $0xe8] sm:$0xff]
      %v217 = vld [vmem:[#allocation8 + $0xf0] sm:$0xff]
      %v218 = vld [vmem:[#allocation8 + $0xf8] sm:$0xff]
      %v219 = vld [vmem:[#allocation8 + $0x100] sm:$0xff]
      %v220 = vld [vmem:[#allocation8 + $0x108] sm:$0xff]
      %v221 = vld [vmem:[#allocation8 + $0x110] sm:$0xff]
      %v222 = vld [vmem:[#allocation8 + $0x118] sm:$0xff]
      %v223 = vld [vmem:[#allocation8 + $0x120] sm:$0xff]
      %v224 = vld [vmem:[#allocation8 + $0x128] sm:$0xff]
      %v225 = vld [vmem:[#allocation8 + $0x130] sm:$0xff]
      %v226 = vld [vmem:[#allocation8 + $0x138] sm:$0xff]
      %v227 = vld [vmem:[#allocation8 + $0x140] sm:$0xff]
      %v228 = vld [vmem:[#allocation8 + $0x148] sm:$0xff]
      %v229 = vld [vmem:[#allocation8 + $0x150] sm:$0xff]
      %v230 = vld [vmem:[#allocation8 + $0x158] sm:$0xff]
      %v231 = vld [vmem:[#allocation8 + $0x160] sm:$0xff]
      %v232 = vld [vmem:[#allocation8 + $0x168] sm:$0xff]
      %v233 = vld [vmem:[#allocation8 + $0x170] sm:$0xff]
      %v234 = vld [vmem:[#allocation8 + $0x178] sm:$0xff]
      %235 = vmatprep.subr.mxu0 %v188
      %236 = vmatpush1.msra.mxu0 %v187
      %237 = vmatprep.subr.mxu0 %v191
      %238 = vmatpush1.msra.mxu0 %v190
      %239 = vmatprep.subr.mxu0 %v194
      %240 = vmatpush1.msra.mxu0 %v193
      %241 = vmatprep.subr.mxu0 %v197
      %242 = vmatpush1.msra.mxu0 %v196
      %243 = vmatprep.subr.mxu0 %v200
      %244 = vmatpush1.msra.mxu0 %v199
      %245 = vmatprep.subr.mxu0 %v203
      %246 = vmatpush1.msra.mxu0 %v202
      %247 = vmatprep.subr.mxu0 %v206
      %248 = vmatpush1.msra.mxu0 %v205
      %249 = vmatprep.subr.mxu0 %v209
      %250 = vmatpush1.msra.mxu0 %v208
      %251 = vmatprep.subr.mxu0 %v212
      %252 = vmatpush1.msra.mxu0 %v211
      %253 = vmatprep.subr.mxu0 %v215
      %254 = vmatpush1.msra.mxu0 %v214
      %255 = vmatprep.subr.mxu0 %v218
      %256 = vmatpush1.msra.mxu0 %v217
      %257 = vmatprep.subr.mxu0 %v221
      %258 = vmatpush1.msra.mxu0 %v220
      %259 = vmatprep.subr.mxu0 %v224
      %260 = vmatpush1.msra.mxu0 %v223
      %261 = vmatprep.subr.mxu0 %v227
      %262 = vmatpush1.msra.mxu0 %v226
      %263 = vmatprep.subr.mxu0 %v230
      %264 = vmatpush1.msra.mxu0 %v229
      %265 = vmatprep.subr.mxu0 %v233
      %266 = vmatpush1.msra.mxu0 %v232
      %267 = vmatprep.subr.mxu0 0.0
      %268 = vmatpush1.msra.mxu0 0.0
      %269 = vmatprep.subr.mxu0 0.0
      %270 = vmatpush1.msra.mxu0 0.0
      %271 = vmatprep.subr.mxu0 0.0
      %272 = vmatpush1.msra.mxu0 0.0
      %273 = vmatprep.subr.mxu0 0.0
      %274 = vmatpush1.msra.mxu0 0.0
      %275 = vmatprep.subr.mxu0 0.0
      %276 = vmatpush1.msra.mxu0 0.0
      %277 = vmatprep.subr.mxu0 0.0
      %278 = vmatpush1.msra.mxu0 0.0
      %279 = vmatprep.subr.mxu0 0.0
      %280 = vmatpush1.msra.mxu0 0.0
      %281 = vmatprep.subr.mxu0 0.0
      %282 = vmatpush1.msra.mxu0 0.0
      %283 = vmatprep.subr.mxu0 0.0
      %284 = vmatpush1.msra.mxu0 0.0
      %285 = vmatprep.subr.mxu0 0.0
      %286 = vmatpush1.msra.mxu0 0.0
      %287 = vmatprep.subr.mxu0 0.0
      %288 = vmatpush1.msra.mxu0 0.0
      %289 = vmatprep.subr.mxu0 0.0
      %290 = vmatpush1.msra.mxu0 0.0
      %291 = vmatprep.subr.mxu0 0.0
      %292 = vmatpush1.msra.mxu0 0.0
      %293 = vmatprep.subr.mxu0 0.0
      %294 = vmatpush1.msra.mxu0 0.0
      %295 = vmatprep.subr.mxu0 0.0
      %296 = vmatpush1.msra.mxu0 0.0
      %297 = vmatprep.subr.mxu0 0.0
      %298 = vmatpush1.msra.mxu0 0.0
      %299 = vmatprep.mubr.f32.mxu0 0.0
      %300 = vmatmul.mubr.f32.gmra.mrb[0].mxu0 %v183
      %v301 = vpop.f32.mrb[0].mxu0
      %v302 = vadd.f32 0.0, %v301
      %v303 = vpop.f32.mrb[0].mxu0
      %v304 = vadd.f32 0.0, %v303
      %305 = vmatprep.mubr.f32.mxu0 0.0
      %306 = vmatmul.mubr.f32.gmra.mrb[0].mxu0 %v184
      %v307 = vpop.f32.mrb[0].mxu0
      %v308 = vadd.f32 0.0, %v307
      %v309 = vpop.f32.mrb[0].mxu0
      %v310 = vadd.f32 0.0, %v309
      %311 = vmatprep.mubr.f32.mxu0 0.0
      %312 = vmatmul.mubr.f32.gmra.mrb[0].mxu0 %v185
      %v313 = vpop.f32.mrb[0].mxu0
      %v314 = vadd.f32 0.0, %v313
      %v315 = vpop.f32.mrb[0].mxu0
      %v316 = vadd.f32 0.0, %v315
      %317 = vmatprep.mubr.f32.mxu0 0.0
      %318 = vmatmul.mubr.f32.gmra.mrb[0].mxu0 %v186
      %v319 = vpop.f32.mrb[0].mxu0
      %v320 = vadd.f32 0.0, %v319
      %v321 = vpop.f32.mrb[0].mxu0
      %v322 = vadd.f32 0.0, %v321
      %323 = vdwg.mxu0
      %324 = vmatprep.subr.mxu0 0.0
      %325 = vmatpush1.msra.mxu0 %v189
      %326 = vmatprep.subr.mxu0 0.0
      %327 = vmatpush1.msra.mxu0 %v192
      %328 = vmatprep.subr.mxu0 0.0
      %329 = vmatpush1.msra.mxu0 %v195
      %330 = vmatprep.subr.mxu0 0.0
      %331 = vmatpush1.msra.mxu0 %v198
      %332 = vmatprep.subr.mxu0 0.0
      %333 = vmatpush1.msra.mxu0 %v201
      %334 = vmatprep.subr.mxu0 0.0
      %335 = vmatpush1.msra.mxu0 %v204
      %336 = vmatprep.subr.mxu0 0.0
      %337 = vmatpush1.msra.mxu0 %v207
      %338 = vmatprep.subr.mxu0 0.0
      %339 = vmatpush1.msra.mxu0 %v210
      %340 = vmatprep.subr.mxu0 0.0
      %341 = vmatpush1.msra.mxu0 %v213
      %342 = vmatprep.subr.mxu0 0.0
      %343 = vmatpush1.msra.mxu0 %v216
      %344 = vmatprep.subr.mxu0 0.0
      %345 = vmatpush1.msra.mxu0 %v219
      %346 = vmatprep.subr.mxu0 0.0
      %347 = vmatpush1.msra.mxu0 %v222
      %348 = vmatprep.subr.mxu0 0.0
      %349 = vmatpush1.msra.mxu0 %v225
      %350 = vmatprep.subr.mxu0 0.0
      %351 = vmatpush1.msra.mxu0 %v228
      %352 = vmatprep.subr.mxu0 0.0
      %353 = vmatpush1.msra.mxu0 %v231
      %354 = vmatprep.subr.mxu0 0.0
      %355 = vmatpush1.msra.mxu0 %v234
      %356 = vmatprep.subr.mxu0 0.0
      %357 = vmatpush1.msra.mxu0 0.0
      %358 = vmatprep.subr.mxu0 0.0
      %359 = vmatpush1.msra.mxu0 0.0
      %360 = vmatprep.subr.mxu0 0.0
      %361 = vmatpush1.msra.mxu0 0.0
      %362 = vmatprep.subr.mxu0 0.0
      %363 = vmatpush1.msra.mxu0 0.0
      %364 = vmatprep.subr.mxu0 0.0
      %365 = vmatpush1.msra.mxu0 0.0
      %366 = vmatprep.subr.mxu0 0.0
      %367 = vmatpush1.msra.mxu0 0.0
      %368 = vmatprep.subr.mxu0 0.0
      %369 = vmatpush1.msra.mxu0 0.0
      %370 = vmatprep.subr.mxu0 0.0
      %371 = vmatpush1.msra.mxu0 0.0
      %372 = vmatprep.subr.mxu0 0.0
      %373 = vmatpush1.msra.mxu0 0.0
      %374 = vmatprep.subr.mxu0 0.0
      %375 = vmatpush1.msra.mxu0 0.0
      %376 = vmatprep.subr.mxu0 0.0
      %377 = vmatpush1.msra.mxu0 0.0
      %378 = vmatprep.subr.mxu0 0.0
      %379 = vmatpush1.msra.mxu0 0.0
      %380 = vmatprep.subr.mxu0 0.0
      %381 = vmatpush1.msra.mxu0 0.0
      %382 = vmatprep.subr.mxu0 0.0
      %383 = vmatpush1.msra.mxu0 0.0
      %384 = vmatprep.subr.mxu0 0.0
      %385 = vmatpush1.msra.mxu0 0.0
      %386 = vmatprep.subr.mxu0 0.0
      %387 = vmatpush1.msra.mxu0 0.0
      %388 = vmatprep.mubr.f32.mxu0 0.0
      %389 = vmatmul.mubr.f32.gmra.mrb[0].mxu0 %v183
      %v390 = vpop.f32.mrb[0].mxu0
      %v391 = vadd.f32 0.0, %v390
      %v392 = vpop.f32.mrb[0].mxu0
      %393 = vmatprep.mubr.f32.mxu0 0.0
      %394 = vmatmul.mubr.f32.gmra.mrb[0].mxu0 %v184
      %v395 = vpop.f32.mrb[0].mxu0
      %v396 = vadd.f32 0.0, %v395
      %v397 = vpop.f32.mrb[0].mxu0
      %398 = vmatprep.mubr.f32.mxu0 0.0
      %399 = vmatmul.mubr.f32.gmra.mrb[0].mxu0 %v185
      %v400 = vpop.f32.mrb[0].mxu0
      %v401 = vadd.f32 0.0, %v400
      %v402 = vpop.f32.mrb[0].mxu0
      %403 = vmatprep.mubr.f32.mxu0 0.0
      %404 = vmatmul.mubr.f32.gmra.mrb[0].mxu0 %v186
      %v405 = vpop.f32.mrb[0].mxu0
      %v406 = vadd.f32 0.0, %v405
      %v407 = vpop.f32.mrb[0].mxu0
      %408 = vdwg.mxu0
      %vm409 = vcmp.gt.f32.partialorder %v302, 0.5
      %vm410 = vcmp.gt.f32.partialorder %v304, 0.5
      %vm411 = vcmp.gt.f32.partialorder %v391, 0.5
      %vm412 = vcmp.gt.f32.partialorder %v308, 0.5
      %vm413 = vcmp.gt.f32.partialorder %v310, 0.5
      %vm414 = vcmp.gt.f32.partialorder %v396, 0.5
      %vm415 = vcmp.gt.f32.partialorder %v314, 0.5
      %vm416 = vcmp.gt.f32.partialorder %v316, 0.5
      %vm417 = vcmp.gt.f32.partialorder %v401, 0.5
      %vm418 = vcmp.gt.f32.partialorder %v320, 0.5
      %vm419 = vcmp.gt.f32.partialorder %v322, 0.5
      %vm420 = vcmp.gt.f32.partialorder %v406, 0.5
      %v421 = vld [vmem:[#allocation7] sm:$0xff]
      %v422 = vld [vmem:[#allocation7 + $0x8] sm:$0xf]
      %v423 = vld [vmem:[#allocation7 + $0xc] sm:$0xff]
      %v424 = vld [vmem:[#allocation7 + $0x14] sm:$0xf]
      %v425 = vld [vmem:[#allocation7 + $0x18] sm:$0xff]
      %v426 = vld [vmem:[#allocation7 + $0x20] sm:$0xf]
      %v427 = vld [vmem:[#allocation7 + $0x24] sm:$0xff]
      %v428 = vld [vmem:[#allocation7 + $0x2c] sm:$0xf]
      %v429 = vld [vmem:[#allocation7 + $0x30] sm:$0xff]
      %v430 = vld [vmem:[#allocation7 + $0x38] sm:$0xf]
      %v431 = vld [vmem:[#allocation7 + $0x3c] sm:$0xff]
      %v432 = vld [vmem:[#allocation7 + $0x44] sm:$0xf]
      %v433 = vld [vmem:[#allocation7 + $0x48] sm:$0xff]
      %v434 = vld [vmem:[#allocation7 + $0x50] sm:$0xf]
      %v435 = vld [vmem:[#allocation7 + $0x54] sm:$0xff]
      %v436 = vld [vmem:[#allocation7 + $0x5c] sm:$0xf]
      %v437 = vld [vmem:[#allocation2] sm:$0xff]
      %v438 = vld [vmem:[#allocation2 + $0x8] sm:$0xf]
      %v439 = vld [vmem:[#allocation2 + $0xc] sm:$0xff]
      %v440 = vld [vmem:[#allocation2 + $0x14] sm:$0xf]
      %v441 = vld [vmem:[#allocation2 + $0x18] sm:$0xff]
      %v442 = vld [vmem:[#allocation2 + $0x20] sm:$0xf]
      %v443 = vld [vmem:[#allocation2 + $0x24] sm:$0xff]
      %v444 = vld [vmem:[#allocation2 + $0x2c] sm:$0xf]
      %v445 = vld [vmem:[#allocation2 + $0x30] sm:$0xff]
      %v446 = vld [vmem:[#allocation2 + $0x38] sm:$0xf]
      %v447 = vld [vmem:[#allocation2 + $0x3c] sm:$0xff]
      %v448 = vld [vmem:[#allocation2 + $0x44] sm:$0xf]
      %v449 = vld [vmem:[#allocation2 + $0x48] sm:$0xff]
      %v450 = vld [vmem:[#allocation2 + $0x50] sm:$0xf]
      %v451 = vld [vmem:[#allocation2 + $0x54] sm:$0xff]
      %v452 = vld [vmem:[#allocation2 + $0x5c] sm:$0xf]
      %v453 = vsub.f32 %v437, %v421
      %v454 = vsub.f32 %v438, %v422
      %v455 = vsub.f32 %v439, %v423
      %v456 = vsub.f32 %v440, %v424
      %v457 = vsub.f32 %v441, %v425
      %v458 = vsub.f32 %v442, %v426
      %v459 = vsub.f32 %v443, %v427
      %v460 = vsub.f32 %v444, %v428
      %v461 = vsub.f32 %v445, %v429
      %v462 = vsub.f32 %v446, %v430
      %v463 = vsub.f32 %v447, %v431
      %v464 = vsub.f32 %v448, %v432
      %v465 = vsub.f32 %v449, %v433
      %v466 = vsub.f32 %v450, %v434
      %v467 = vsub.f32 %v451, %v435
      %v468 = vsub.f32 %v452, %v436
      %v485 = vcombine.low %v453, %v455
      %v486 = vcombine.high %v453, %v455
      %v487 = vcombine.low %v454, %v456
      %v488 = vcombine.low %v457, %v459
      %v489 = vcombine.high %v457, %v459
      %v490 = vcombine.low %v458, %v460
      %v491 = vcombine.low %v461, %v463
      %v492 = vcombine.high %v461, %v463
      %v493 = vcombine.low %v462, %v464
      %v494 = vcombine.low %v465, %v467
      %v495 = vcombine.high %v465, %v467
      %v496 = vcombine.low %v466, %v468
      %v509 = vsel %vm409, %v485, 0.0
      %v510 = vsel %vm410, %v486, 0.0
      %v511 = vsel %vm411, %v487, 0.0
      %v512 = vsel %vm412, %v488, 0.0
      %v513 = vsel %vm413, %v489, 0.0
      %v514 = vsel %vm414, %v490, 0.0
      %v515 = vsel %vm415, %v491, 0.0
      %v516 = vsel %vm416, %v492, 0.0
      %v517 = vsel %vm417, %v493, 0.0
      %v518 = vsel %vm418, %v494, 0.0
      %v519 = vsel %vm419, %v495, 0.0
      %v520 = vsel %vm420, %v496, 0.0
      %v521 = vld [vmem:[#allocation10] sm:$0x7]
      %v522 = vmul.f32 %v509, %v509
      %v523 = vmul.f32 %v510, %v510
      %v524 = vmul.f32 %v511, %v511
      %v525 = vmul.f32 %v512, %v512
      %v526 = vmul.f32 %v513, %v513
      %v527 = vmul.f32 %v514, %v514
      %v528 = vmul.f32 %v515, %v515
      %v529 = vmul.f32 %v516, %v516
      %v530 = vmul.f32 %v517, %v517
      %v531 = vmul.f32 %v518, %v518
      %v532 = vmul.f32 %v519, %v519
      %v533 = vmul.f32 %v520, %v520
      %v534 = vadd.f32 %v522, %v525
      %v535 = vadd.f32 %v534, %v528
      %v536 = vadd.f32 %v535, %v531
      %v537 = vrot.slane %v536, 4
      %v538 = vadd.f32 %v536, %v537
      %v539 = vrot.slane %v538, 2
      %v540 = vadd.f32 %v538, %v539
      %v541 = vrot.slane %v540, 1
      %v542 = vadd.f32 %v540, %v541
      %v543 = vadd.f32 %v523, %v526
      %v544 = vadd.f32 %v543, %v529
      %v545 = vadd.f32 %v544, %v532
      %v546 = vrot.slane %v545, 4
      %v547 = vadd.f32 %v545, %v546
      %v548 = vrot.slane %v547, 2
      %v549 = vadd.f32 %v547, %v548
      %v550 = vrot.slane %v549, 1
      %v551 = vadd.f32 %v549, %v550
      %v552 = vadd.f32 %v524, %v527
      %v553 = vadd.f32 %v552, %v530
      %v554 = vadd.f32 %v553, %v533
      %v555 = vrot.slane %v554, 4
      %v556 = vadd.f32 %v554, %v555
      %v557 = vrot.slane %v556, 2
      %v558 = vadd.f32 %v556, %v557
      %v559 = vrot.slane %v558, 1
      %v560 = vadd.f32 %v558, %v559
      %v564 = vcombine.low %v542, %v551
      %v566 = vunpack.c.l.s4 1966171168
      %v567 = vunpack.c.0.s8 %v566
      %v568 = vlaneseq
      %v569 = vshrl.u32 %v568, 7
      %v570 = vsub.s32 %v567, %v569
      %v571 = vrot.slane %v564, %v570
      %v573 = vunpack.c.l.s4 1966171168
      %v574 = vunpack.c.0.s8 %v573
      %v575 = vlaneseq
      %v576 = vshrl.u32 %v575, 7
      %v577 = vsub.s32 %v574, %v576
      %v578 = vrot.slane %v560, %v577
      %v579 = vcombine.low %v571, %v578
      %v581 = vunpack.c.l.s4 1966171168
      %v582 = vunpack.c.0.s8 %v581
      %v583 = vlaneseq
      %v584 = vshrl.u32 %v583, 7
      %v585 = vsub.s32 %v582, %v584
      %v586 = vrot.slane %v579, %v585
      %v588 = vadd.f32 %v521, %v586
      %v589 = vlaneseq
      %vm590 = vcmp.ge.s32.totalorder %v589, 0
      %vm591 = vcmp.lt.s32.totalorder %v589, 384
      %vm592 = vmand %vm590, %vm591
      %593 = vst.msk [vmem:[#allocation10] sm:$0x7] %vm592, %v588
      %v594 = vld [vmem:[#allocation5] sm:$0xff]
      %v595 = vld [vmem:[#allocation5 + $0x8] sm:$0xf]
      %v596 = vld [vmem:[#allocation5 + $0xc] sm:$0xff]
      %v597 = vld [vmem:[#allocation5 + $0x14] sm:$0xf]
      %v598 = vld [vmem:[#allocation5 + $0x18] sm:$0xff]
      %v599 = vld [vmem:[#allocation5 + $0x20] sm:$0xf]
      %v600 = vld [vmem:[#allocation5 + $0x24] sm:$0xff]
      %v601 = vld [vmem:[#allocation5 + $0x2c] sm:$0xf]
      %v602 = vld [vmem:[#allocation5 + $0x30] sm:$0xff]
      %v603 = vld [vmem:[#allocation5 + $0x38] sm:$0xf]
      %v604 = vld [vmem:[#allocation5 + $0x3c] sm:$0xff]
      %v605 = vld [vmem:[#allocation5 + $0x44] sm:$0xf]
      %v606 = vld [vmem:[#allocation5 + $0x48] sm:$0xff]
      %v607 = vld [vmem:[#allocation5 + $0x50] sm:$0xf]
      %v608 = vld [vmem:[#allocation5 + $0x54] sm:$0xff]
      %v609 = vld [vmem:[#allocation5 + $0x5c] sm:$0xf]
      %v610 = vsub.f32 %v594, %v421
      %v611 = vsub.f32 %v595, %v422
      %v612 = vsub.f32 %v596, %v423
      %v613 = vsub.f32 %v597, %v424
      %v614 = vsub.f32 %v598, %v425
      %v615 = vsub.f32 %v599, %v426
      %v616 = vsub.f32 %v600, %v427
      %v617 = vsub.f32 %v601, %v428
      %v618 = vsub.f32 %v602, %v429
      %v619 = vsub.f32 %v603, %v430
      %v620 = vsub.f32 %v604, %v431
      %v621 = vsub.f32 %v605, %v432
      %v622 = vsub.f32 %v606, %v433
      %v623 = vsub.f32 %v607, %v434
      %v624 = vsub.f32 %v608, %v435
      %v625 = vsub.f32 %v609, %v436
      %v642 = vcombine.low %v610, %v612
      %v643 = vcombine.high %v610, %v612
      %v644 = vcombine.low %v611, %v613
      %v645 = vcombine.low %v614, %v616
      %v646 = vcombine.high %v614, %v616
      %v647 = vcombine.low %v615, %v617
      %v648 = vcombine.low %v618, %v620
      %v649 = vcombine.high %v618, %v620
      %v650 = vcombine.low %v619, %v621
      %v651 = vcombine.low %v622, %v624
      %v652 = vcombine.high %v622, %v624
      %v653 = vcombine.low %v623, %v625
      %v666 = vsel %vm409, %v642, 0.0
      %v667 = vsel %vm410, %v643, 0.0
      %v668 = vsel %vm411, %v644, 0.0
      %v669 = vsel %vm412, %v645, 0.0
      %v670 = vsel %vm413, %v646, 0.0
      %v671 = vsel %vm414, %v647, 0.0
      %v672 = vsel %vm415, %v648, 0.0
      %v673 = vsel %vm416, %v649, 0.0
      %v674 = vsel %vm417, %v650, 0.0
      %v675 = vsel %vm418, %v651, 0.0
      %v676 = vsel %vm419, %v652, 0.0
      %v677 = vsel %vm420, %v653, 0.0
      %v678 = vld [vmem:[#allocation11] sm:$0x7]
      %v679 = vmul.f32 %v666, %v666
      %v680 = vmul.f32 %v667, %v667
      %v681 = vmul.f32 %v668, %v668
      %v682 = vmul.f32 %v669, %v669
      %v683 = vmul.f32 %v670, %v670
      %v684 = vmul.f32 %v671, %v671
      %v685 = vmul.f32 %v672, %v672
      %v686 = vmul.f32 %v673, %v673
      %v687 = vmul.f32 %v674, %v674
      %v688 = vmul.f32 %v675, %v675
      %v689 = vmul.f32 %v676, %v676
      %v690 = vmul.f32 %v677, %v677
      %v691 = vadd.f32 %v679, %v682
      %v692 = vadd.f32 %v691, %v685
      %v693 = vadd.f32 %v692, %v688
      %v694 = vrot.slane %v693, 4
      %v695 = vadd.f32 %v693, %v694
      %v696 = vrot.slane %v695, 2
      %v697 = vadd.f32 %v695, %v696
      %v698 = vrot.slane %v697, 1
      %v699 = vadd.f32 %v697, %v698
      %v700 = vadd.f32 %v680, %v683
      %v701 = vadd.f32 %v700, %v686
      %v702 = vadd.f32 %v701, %v689
      %v703 = vrot.slane %v702, 4
      %v704 = vadd.f32 %v702, %v703
      %v705 = vrot.slane %v704, 2
      %v706 = vadd.f32 %v704, %v705
      %v707 = vrot.slane %v706, 1
      %v708 = vadd.f32 %v706, %v707
      %v709 = vadd.f32 %v681, %v684
      %v710 = vadd.f32 %v709, %v687
      %v711 = vadd.f32 %v710, %v690
      %v712 = vrot.slane %v711, 4
      %v713 = vadd.f32 %v711, %v712
      %v714 = vrot.slane %v713, 2
      %v715 = vadd.f32 %v713, %v714
      %v716 = vrot.slane %v715, 1
      %v717 = vadd.f32 %v715, %v716
      %v721 = vcombine.low %v699, %v708
      %v723 = vunpack.c.l.s4 1966171168
      %v724 = vunpack.c.0.s8 %v723
      %v725 = vlaneseq
      %v726 = vshrl.u32 %v725, 7
      %v727 = vsub.s32 %v724, %v726
      %v728 = vrot.slane %v721, %v727
      %v730 = vunpack.c.l.s4 1966171168
      %v731 = vunpack.c.0.s8 %v730
      %v732 = vlaneseq
      %v733 = vshrl.u32 %v732, 7
      %v734 = vsub.s32 %v731, %v733
      %v735 = vrot.slane %v717, %v734
      %v736 = vcombine.low %v728, %v735
      %v738 = vunpack.c.l.s4 1966171168
      %v739 = vunpack.c.0.s8 %v738
      %v740 = vlaneseq
      %v741 = vshrl.u32 %v740, 7
      %v742 = vsub.s32 %v739, %v741
      %v743 = vrot.slane %v736, %v742
      %v745 = vadd.f32 %v678, %v743
      %746 = vst.msk [vmem:[#allocation11] sm:$0x7] %vm592, %v745
    $region45: #{tpu_custom_call.1} parent=1 // pred_fallthru
      _
    // Predicated region
    $region46: #{tpu_custom_call.1} parent=1 // pred_check
      _
    $region47: #{tpu_custom_call.1} parent=1 // pred_check_branch
      %748 = sbr.rel (0) target = $region49
    $region48: #{tpu_custom_call.1} parent=1 // pred_region
      %s750 = ssub.s32 48, 48
      %751 = vsyncadd [#allocation4], %s750
      %s753 = sshll.u32 [#allocation10], 4
      %s754 = int_to_ptr.vmem [resolvable:$true] %s753
      %756 = dma.vmem_to_hbm [thread:$0]  %s754, 48, %s5, [#allocation4]
    $region49: #{tpu_custom_call.1} parent=1 // pred_fallthru
      _
    // Predicated region
    $region50: #{tpu_custom_call.1} parent=1 // pred_check
      _
    $region51: #{tpu_custom_call.1} parent=1 // pred_check_branch
      %758 = sbr.rel (0) target = $region53
    $region52: #{tpu_custom_call.1} parent=1 // pred_region
      %s760 = ssub.s32 48, 48
      %761 = vsyncadd [#allocation12], %s760
      %s763 = sshll.u32 [#allocation11], 4
      %s764 = int_to_ptr.vmem [resolvable:$true] %s763
      %766 = dma.vmem_to_hbm [thread:$0]  %s764, 48, %s6, [#allocation12]
    $region53: #{tpu_custom_call.1} parent=1 // pred_fallthru
      _
    // Predicated region
    $region54: #{tpu_custom_call.1} parent=1 // pred_check
      _
    $region55: #{tpu_custom_call.1} parent=1 // pred_check_branch
      %768 = sbr.rel (0) target = $region57
    $region56: #{tpu_custom_call.1} parent=1 // pred_region
      %769 = dma.done [#allocation4], 48
    $region57: #{tpu_custom_call.1} parent=1 // pred_fallthru
      _
    // Predicated region
    $region58: #{tpu_custom_call.1} parent=1 // pred_check
      _
    $region59: #{tpu_custom_call.1} parent=1 // pred_check_branch
      %771 = sbr.rel (0) target = $region61
    $region60: #{tpu_custom_call.1} parent=1 // pred_region
      %772 = dma.done [#allocation12], 48
    $region61: #{tpu_custom_call.1} parent=1 // pred_fallthru
      _
    %773 = vsyncpa [#allocation3], 1
    %774 = vsyncpa [#allocation6], 1
    %775 = vsyncpa [#allocation9], 1
    %776 = vsyncpa [#allocation4], 1
    %777 = vsyncpa [#allocation12], 1

</llo_original>
